<compile_context>
chip_gen: v5e
topology: v5e:2x2
jax: 0.10.0
libtpu: 0.0.40
codegen_flags: <defaults>
</compile_context>

<pallas_src>
import functools

import jax
import jax.numpy as jnp
from jax.experimental import pallas as pl
from jax.experimental.pallas import tpu as pltpu

PAD = 3
KH = 7
KW = 7


def _fusion_kernel(x_ref, w_ref, b_ref, o_ref, *, tile_h):
    # x_ref: (1, tile_h + 6, (W+6)*Cin)  bf16 row band of the reflection-padded image
    # w_ref: (7, (W+6)*Cin, W*Cout)      bf16 banded conv weights (VMEM-resident across grid)
    # b_ref: (1, W*Cout)                 f32 bias tiled across W
    # o_ref: (1, tile_h, W*Cout)
    acc = jnp.dot(x_ref[0, 0:tile_h, :], w_ref[0],
                  preferred_element_type=jnp.float32)
    for kh in range(1, KH):
        acc = acc + jnp.dot(x_ref[0, kh:kh + tile_h, :], w_ref[kh],
                            preferred_element_type=jnp.float32)
    acc = acc + b_ref[...]
    o_ref[0] = jnp.tanh(acc).astype(o_ref.dtype)


def _pick_tile_h(H):
    # Largest row-tile <= 128 that divides H and is a multiple of 8 (fall back to H itself).
    for th in range(min(H, 128), 0, -1):
        if H % th == 0 and (th % 8 == 0 or th == H):
            return th
    return H


def _banded_weights(w_hwio, W, compute_dtype):
    # B[kh, wp*Cin + c, w*Cout + o] = w[kh, wp - w, c, o]  (zero unless 0 <= wp - w < 7)
    Wp = W + 2 * PAD
    Cin, Cout = w_hwio.shape[2], w_hwio.shape[3]
    shift = (jnp.arange(Wp)[:, None, None]
             == jnp.arange(W)[None, :, None] + jnp.arange(KW)[None, None, :]
             ).astype(jnp.float32)                                    # (Wp, W, KW)
    B = jnp.einsum("pwk,hkco->hpcwo", shift, w_hwio.astype(jnp.float32))
    return B.reshape(KH, Wp * Cin, W * Cout).astype(compute_dtype)


@functools.partial(jax.jit, static_argnames=("compute_dtype",))
def fusion_forward(x_nchw, w_oihw, bias, *, compute_dtype=jnp.bfloat16):
    """ReflectionPad2d(3) -> Conv2d(Cin, Cout, 7, bias=True) -> Tanh.

    x_nchw: (N, Cin, H, W); w_oihw: (Cout, Cin, 7, 7); bias: (Cout,).  Returns (N, Cout, H, W).
    """
    N, Cin, H, W = x_nchw.shape
    Cout = w_oihw.shape[0]
    Hp, Wp = H + 2 * PAD, W + 2 * PAD

    # ReflectionPad2d(3) (jnp 'reflect' == PyTorch reflection padding), NHWC, flatten (W, Cin).
    x_nhwc = jnp.transpose(x_nchw, (0, 2, 3, 1))
    x_pad = jnp.pad(x_nhwc, ((0, 0), (PAD, PAD), (PAD, PAD), (0, 0)), mode="reflect")
    x2d = x_pad.reshape(N, Hp, Wp * Cin).astype(compute_dtype)

    # Output-row bands with a 6-row halo (at small H: nH == 1, zero duplication).
    tile_h = _pick_tile_h(H)
    nH = H // tile_h
    bands = [x2d[:, i * tile_h:i * tile_h + tile_h + 2 * PAD, :] for i in range(nH)]
    x_bands = jnp.stack(bands, axis=1).reshape(N * nH, tile_h + 2 * PAD, Wp * Cin)

    # TODO(synk): for very large W, additionally tile the W axis (6-column halo) so the banded
    # weight matrix B = (7, (W+6)*Cin, W*Cout) stays within v7x's 64 MiB VMEM.
    w_hwio = jnp.transpose(w_oihw, (2, 3, 1, 0))                      # (7, 7, Cin, Cout)
    B = _banded_weights(w_hwio, W, compute_dtype)                     # (7, Wp*Cin, W*Cout)
    b_tiled = jnp.tile(bias.astype(jnp.float32), W).reshape(1, W * Cout)

    WpC, WCout = Wp * Cin, W * Cout
    out_bands = pl.pallas_call(
        functools.partial(_fusion_kernel, tile_h=tile_h),
        out_shape=jax.ShapeDtypeStruct((N * nH, tile_h, WCout), x_nchw.dtype),
        grid_spec=pltpu.PrefetchScalarGridSpec(
            num_scalar_prefetch=0,
            grid=(N * nH,),
            in_specs=[
                pl.BlockSpec((1, tile_h + 2 * PAD, WpC), lambda b: (b, 0, 0)),
                pl.BlockSpec((KH, WpC, WCout), lambda b: (0, 0, 0)),
                pl.BlockSpec((1, WCout), lambda b: (0, 0)),
            ],
            out_specs=pl.BlockSpec((1, tile_h, WCout), lambda b: (b, 0, 0)),
        ),
        compiler_params=pltpu.CompilerParams(
            dimension_semantics=("parallel",),
            vmem_limit_bytes=32 * 1024 * 1024,
        ),
    )(x_bands, B, b_tiled)

    out = out_bands.reshape(N, H, W, Cout)
    return jnp.transpose(out, (0, 3, 1, 2))


def _reference_forward(x_nchw, w_oihw, bias):
    # Plain-JAX reference with identical semantics (used only for correctness check).
    xp = jnp.pad(x_nchw, ((0, 0), (0, 0), (PAD, PAD), (PAD, PAD)), mode="reflect")
    y = jax.lax.conv_general_dilated(
        xp, w_oihw, window_strides=(1, 1), padding="VALID",
        dimension_numbers=("NCHW", "OIHW", "NCHW"),
        precision=jax.lax.Precision.HIGHEST)
    return jnp.tanh(y + bias.reshape(1, -1, 1, 1))


if __name__ == "__main__":
    # Small shapes consistent with the module: batch=2, in_features=4, spatial=16, out_features=8.
    N, Cin, H, W, Cout = 2, 4, 16, 16, 8

    key = jax.random.PRNGKey(0)
    kx, kw, kb = jax.random.split(key, 3)
    x = jax.random.normal(kx, (N, Cin, H, W), dtype=jnp.float32)
    w = 0.05 * jax.random.normal(kw, (Cout, Cin, KH, KW), dtype=jnp.float32)
    b = 0.05 * jax.random.normal(kb, (Cout,), dtype=jnp.float32)

    out = jax.block_until_ready(fusion_forward(x, w, b))
    ref = jax.block_until_ready(_reference_forward(x, w, b))

    assert out.shape == (N, Cout, H, W)
    err = float(jnp.max(jnp.abs(out - ref)))
    # bf16 MXU operands with f32 accumulation; tanh output is in [-1, 1] so abs tol is meaningful.
    assert err < 2e-2, f"mismatch vs JAX conv reference: max abs err {err}"

    print("KERNEL_OK")
</pallas_src>

<mosaic_0001>
module attributes {stable_mosaic.version = 11 : i64} {
  func.func @_fusion_kernel(%arg0: i32, %arg1: memref<1x22x88xbf16, #tpu.memory_space<vmem>>, %arg2: memref<7x88x128xbf16, #tpu.memory_space<vmem>>, %arg3: memref<1x128xf32, #tpu.memory_space<vmem>>, %arg4: memref<1x16x128xf32, #tpu.memory_space<vmem>>) attributes {dimension_semantics = [#tpu.dimension_semantics<parallel>], iteration_bounds = array<i64: 2>, scalar_prefetch = 0 : i64, scratch_operands = 0 : i64, tpu.core_type = #tpu.core_type<tc>, window_params = [{transform_indices = @transform_0, window_bounds = array<i64: 1, 22, 88>}, {pipeline_mode = #tpu.pipeline_mode<synchronous>, transform_indices = @transform_1, window_bounds = array<i64: 7, 88, 128>}, {pipeline_mode = #tpu.pipeline_mode<synchronous>, transform_indices = @transform_2, window_bounds = array<i64: 1, 128>}, {transform_indices = @transform_3, window_bounds = array<i64: 1, 16, 128>}]} {
    %c0 = arith.constant 0 : index
    %c0_0 = arith.constant 0 : index
    %c0_1 = arith.constant 0 : index
    %0 = vector.load %arg1[%c0, %c0_0, %c0_1] : memref<1x22x88xbf16, #tpu.memory_space<vmem>>, vector<1x16x88xbf16>
    %1 = vector.shape_cast %0 : vector<1x16x88xbf16> to vector<16x88xbf16>
    %c0_2 = arith.constant 0 : index
    %c0_3 = arith.constant 0 : index
    %c0_4 = arith.constant 0 : index
    %2 = vector.load %arg2[%c0_2, %c0_3, %c0_4] : memref<7x88x128xbf16, #tpu.memory_space<vmem>>, vector<1x88x128xbf16>
    %3 = vector.shape_cast %2 : vector<1x88x128xbf16> to vector<88x128xbf16>
    %cst = arith.constant dense<0.000000e+00> : vector<16x128xf32>
    %4 = tpu.matmul %1, %3, %cst {dimension_numbers = #tpu.dot_dimension_numbers<[1], [0], [0], [1], [0, 0, 1, 1], [], []>} : vector<16x88xbf16>, vector<88x128xbf16>, vector<16x128xf32> -> vector<16x128xf32>
    %c0_5 = arith.constant 0 : index
    %c1 = arith.constant 1 : index
    %c0_6 = arith.constant 0 : index
    %5 = vector.load %arg1[%c0_5, %c1, %c0_6] : memref<1x22x88xbf16, #tpu.memory_space<vmem>>, vector<1x16x88xbf16>
    %6 = vector.shape_cast %5 : vector<1x16x88xbf16> to vector<16x88xbf16>
    %c1_7 = arith.constant 1 : index
    %c0_8 = arith.constant 0 : index
    %c0_9 = arith.constant 0 : index
    %7 = vector.load %arg2[%c1_7, %c0_8, %c0_9] : memref<7x88x128xbf16, #tpu.memory_space<vmem>>, vector<1x88x128xbf16>
    %8 = vector.shape_cast %7 : vector<1x88x128xbf16> to vector<88x128xbf16>
    %cst_10 = arith.constant dense<0.000000e+00> : vector<16x128xf32>
    %9 = tpu.matmul %6, %8, %cst_10 {dimension_numbers = #tpu.dot_dimension_numbers<[1], [0], [0], [1], [0, 0, 1, 1], [], []>} : vector<16x88xbf16>, vector<88x128xbf16>, vector<16x128xf32> -> vector<16x128xf32>
    %10 = arith.addf %4, %9 : vector<16x128xf32>
    %c0_11 = arith.constant 0 : index
    %c2 = arith.constant 2 : index
    %c0_12 = arith.constant 0 : index
    %11 = vector.load %arg1[%c0_11, %c2, %c0_12] : memref<1x22x88xbf16, #tpu.memory_space<vmem>>, vector<1x16x88xbf16>
    %12 = vector.shape_cast %11 : vector<1x16x88xbf16> to vector<16x88xbf16>
    %c2_13 = arith.constant 2 : index
    %c0_14 = arith.constant 0 : index
    %c0_15 = arith.constant 0 : index
    %13 = vector.load %arg2[%c2_13, %c0_14, %c0_15] : memref<7x88x128xbf16, #tpu.memory_space<vmem>>, vector<1x88x128xbf16>
    %14 = vector.shape_cast %13 : vector<1x88x128xbf16> to vector<88x128xbf16>
    %cst_16 = arith.constant dense<0.000000e+00> : vector<16x128xf32>
    %15 = tpu.matmul %12, %14, %cst_16 {dimension_numbers = #tpu.dot_dimension_numbers<[1], [0], [0], [1], [0, 0, 1, 1], [], []>} : vector<16x88xbf16>, vector<88x128xbf16>, vector<16x128xf32> -> vector<16x128xf32>
    %16 = arith.addf %10, %15 : vector<16x128xf32>
    %c0_17 = arith.constant 0 : index
    %c3 = arith.constant 3 : index
    %c0_18 = arith.constant 0 : index
    %17 = vector.load %arg1[%c0_17, %c3, %c0_18] : memref<1x22x88xbf16, #tpu.memory_space<vmem>>, vector<1x16x88xbf16>
    %18 = vector.shape_cast %17 : vector<1x16x88xbf16> to vector<16x88xbf16>
    %c3_19 = arith.constant 3 : index
    %c0_20 = arith.constant 0 : index
    %c0_21 = arith.constant 0 : index
    %19 = vector.load %arg2[%c3_19, %c0_20, %c0_21] : memref<7x88x128xbf16, #tpu.memory_space<vmem>>, vector<1x88x128xbf16>
    %20 = vector.shape_cast %19 : vector<1x88x128xbf16> to vector<88x128xbf16>
    %cst_22 = arith.constant dense<0.000000e+00> : vector<16x128xf32>
    %21 = tpu.matmul %18, %20, %cst_22 {dimension_numbers = #tpu.dot_dimension_numbers<[1], [0], [0], [1], [0, 0, 1, 1], [], []>} : vector<16x88xbf16>, vector<88x128xbf16>, vector<16x128xf32> -> vector<16x128xf32>
    %22 = arith.addf %16, %21 : vector<16x128xf32>
    %c0_23 = arith.constant 0 : index
    %c4 = arith.constant 4 : index
    %c0_24 = arith.constant 0 : index
    %23 = vector.load %arg1[%c0_23, %c4, %c0_24] : memref<1x22x88xbf16, #tpu.memory_space<vmem>>, vector<1x16x88xbf16>
    %24 = vector.shape_cast %23 : vector<1x16x88xbf16> to vector<16x88xbf16>
    %c4_25 = arith.constant 4 : index
    %c0_26 = arith.constant 0 : index
    %c0_27 = arith.constant 0 : index
    %25 = vector.load %arg2[%c4_25, %c0_26, %c0_27] : memref<7x88x128xbf16, #tpu.memory_space<vmem>>, vector<1x88x128xbf16>
    %26 = vector.shape_cast %25 : vector<1x88x128xbf16> to vector<88x128xbf16>
    %cst_28 = arith.constant dense<0.000000e+00> : vector<16x128xf32>
    %27 = tpu.matmul %24, %26, %cst_28 {dimension_numbers = #tpu.dot_dimension_numbers<[1], [0], [0], [1], [0, 0, 1, 1], [], []>} : vector<16x88xbf16>, vector<88x128xbf16>, vector<16x128xf32> -> vector<16x128xf32>
    %28 = arith.addf %22, %27 : vector<16x128xf32>
    %c0_29 = arith.constant 0 : index
    %c5 = arith.constant 5 : index
    %c0_30 = arith.constant 0 : index
    %29 = vector.load %arg1[%c0_29, %c5, %c0_30] : memref<1x22x88xbf16, #tpu.memory_space<vmem>>, vector<1x16x88xbf16>
    %30 = vector.shape_cast %29 : vector<1x16x88xbf16> to vector<16x88xbf16>
    %c5_31 = arith.constant 5 : index
    %c0_32 = arith.constant 0 : index
    %c0_33 = arith.constant 0 : index
    %31 = vector.load %arg2[%c5_31, %c0_32, %c0_33] : memref<7x88x128xbf16, #tpu.memory_space<vmem>>, vector<1x88x128xbf16>
    %32 = vector.shape_cast %31 : vector<1x88x128xbf16> to vector<88x128xbf16>
    %cst_34 = arith.constant dense<0.000000e+00> : vector<16x128xf32>
    %33 = tpu.matmul %30, %32, %cst_34 {dimension_numbers = #tpu.dot_dimension_numbers<[1], [0], [0], [1], [0, 0, 1, 1], [], []>} : vector<16x88xbf16>, vector<88x128xbf16>, vector<16x128xf32> -> vector<16x128xf32>
    %34 = arith.addf %28, %33 : vector<16x128xf32>
    %c0_35 = arith.constant 0 : index
    %c6 = arith.constant 6 : index
    %c0_36 = arith.constant 0 : index
    %35 = vector.load %arg1[%c0_35, %c6, %c0_36] : memref<1x22x88xbf16, #tpu.memory_space<vmem>>, vector<1x16x88xbf16>
    %36 = vector.shape_cast %35 : vector<1x16x88xbf16> to vector<16x88xbf16>
    %c6_37 = arith.constant 6 : index
    %c0_38 = arith.constant 0 : index
    %c0_39 = arith.constant 0 : index
    %37 = vector.load %arg2[%c6_37, %c0_38, %c0_39] : memref<7x88x128xbf16, #tpu.memory_space<vmem>>, vector<1x88x128xbf16>
    %38 = vector.shape_cast %37 : vector<1x88x128xbf16> to vector<88x128xbf16>
    %cst_40 = arith.constant dense<0.000000e+00> : vector<16x128xf32>
    %39 = tpu.matmul %36, %38, %cst_40 {dimension_numbers = #tpu.dot_dimension_numbers<[1], [0], [0], [1], [0, 0, 1, 1], [], []>} : vector<16x88xbf16>, vector<88x128xbf16>, vector<16x128xf32> -> vector<16x128xf32>
    %40 = arith.addf %34, %39 : vector<16x128xf32>
    %c0_41 = arith.constant 0 : index
    %c0_42 = arith.constant 0 : index
    %41 = vector.load %arg3[%c0_41, %c0_42] : memref<1x128xf32, #tpu.memory_space<vmem>>, vector<1x128xf32>
    %42 = vector.broadcast %41 : vector<1x128xf32> to vector<16x128xf32>
    %43 = arith.addf %40, %42 : vector<16x128xf32>
    %44 = math.tanh %43 : vector<16x128xf32>
    %c0_43 = arith.constant 0 : index
    %c0_44 = arith.constant 0 : index
    %c0_45 = arith.constant 0 : index
    %45 = vector.load %arg4[%c0_43, %c0_44, %c0_45] : memref<1x16x128xf32, #tpu.memory_space<vmem>>, vector<1x16x128xf32>
    %46 = vector.shape_cast %45 : vector<1x16x128xf32> to vector<16x128xf32>
    %47 = vector.shape_cast %44 : vector<16x128xf32> to vector<1x16x128xf32>
    tpu.vector_store %arg4[%c0_43, %c0_44, %c0_45], %47 {strides = array<i32>} : memref<1x16x128xf32, #tpu.memory_space<vmem>>, vector<1x16x128xf32>,
    return
  }
  func.func @transform_0(%arg0: i32) -> (i32, i32, i32) {
    %c0_i32 = arith.constant 0 : i32
    %c0_i32_0 = arith.constant 0 : i32
    %c0_i32_1 = arith.constant 0 : i32
    return %arg0, %c0_i32, %c0_i32_0 : i32, i32, i32
  }
  func.func @transform_1(%arg0: i32) -> (i32, i32, i32) {
    %c0_i32 = arith.constant 0 : i32
    %c0_i32_0 = arith.constant 0 : i32
    %c0_i32_1 = arith.constant 0 : i32
    %c0_i32_2 = arith.constant 0 : i32
    return %c0_i32, %c0_i32_0, %c0_i32_1 : i32, i32, i32
  }
  func.func @transform_2(%arg0: i32) -> (i32, i32) {
    %c0_i32 = arith.constant 0 : i32
    %c0_i32_0 = arith.constant 0 : i32
    %c0_i32_1 = arith.constant 0 : i32
    return %c0_i32, %c0_i32_0 : i32, i32
  }
  func.func @transform_3(%arg0: i32) -> (i32, i32, i32) {
    %c0_i32 = arith.constant 0 : i32
    %c0_i32_0 = arith.constant 0 : i32
    %c0_i32_1 = arith.constant 0 : i32
    return %arg0, %c0_i32, %c0_i32_0 : i32, i32, i32
  }
}

</mosaic_0001>

<llo_original>
// kernel: tile.8
$region0: #{tile.8}
  #allocation0 [shape = 's32[1]{0}', space=sflag, size = 0x4, scoped, tag = 'scoped memory for tile.8']
  %s0 = inlined_call_operand.vmem [shape: f32[8], index: 0, kind: input, shape index: {}]
  %s1 = inlined_call_operand.vmem [shape: f32[16,8], index: 1, kind: output, shape index: {}]
  // Predicated region
  $region2: #{tile.8} parent=0 // pred_check
    _
  $region3: #{tile.8} parent=0 // pred_check_branch
    %3 = sbr.rel (0) target = $region5
  $region4: #{tile.8} parent=0 // pred_region
    _
  $region5: #{tile.8} parent=0 // pred_fallthru
    _
  %v4 = vld [vmem:[%s0] ss:$0 sm:$0xff]
  %5 = vst [vmem:[%s1] sm:$0xff] %v4
  %s6 = scalar_lea.vmem %s1, 8
  %7 = vst [vmem:[%s6] sm:$0xff] %v4

// kernel: tile.9
$region0: #{tile.9}
  %s0 = inlined_call_operand.vmem [shape: f32[16,8], index: 0, kind: input, shape index: {}]
  %s1 = inlined_call_operand.vmem [shape: f32[1,128], index: 1, kind: output, shape index: {}]
  $region1: #{tile.9} parent=0
    #allocation0 [shape = 'u8[4096]{0}', space=vmem, size = 0x1000, scoped, tag = 'scoped mem for output reshape']
    %v2 = vld [vmem:[%s0] sm:$0x1]
    %vm3 = vcmask 64512
    %4 = vst.msk [vmem:[#allocation0] sm:$0x1] %vm3, %v2
    %s5 = scalar_lea.vmem %s0, 15
    %v6 = vld [vmem:[%s5] sm:$0x1]
    %7 = vrot.lane.b32.xlu0 %v6, 120
    %v8 = vpop.permute.xlu0 %7
    %vm9 = vcmask 1048512
    %10 = vst.msk [vmem:[#allocation0] sm:$0x1] %vm9, %v8
    %s11 = scalar_lea.vmem %s0, 14
    %v12 = vld [vmem:[%s11] sm:$0x1]
    %13 = vrot.lane.b32.xlu0 %v12, 112
    %v14 = vpop.permute.xlu0 %13
    %vm15 = vcmask 982912
    %16 = vst.msk [vmem:[#allocation0] sm:$0x1] %vm15, %v14
    %s17 = scalar_lea.vmem %s0, 13
    %v18 = vld [vmem:[%s17] sm:$0x1]
    %19 = vrot.lane.b32.xlu0 %v18, 104
    %v20 = vpop.permute.xlu0 %19
    %vm21 = vcmask 917312
    %22 = vst.msk [vmem:[#allocation0] sm:$0x1] %vm21, %v20
    %s23 = scalar_lea.vmem %s0, 12
    %v24 = vld [vmem:[%s23] sm:$0x1]
    %25 = vrot.lane.b32.xlu0 %v24, 96
    %v26 = vpop.permute.xlu0 %25
    %vm27 = vcmask 851712
    %28 = vst.msk [vmem:[#allocation0] sm:$0x1] %vm27, %v26
    %s29 = scalar_lea.vmem %s0, 11
    %v30 = vld [vmem:[%s29] sm:$0x1]
    %31 = vrot.lane.b32.xlu0 %v30, 88
    %v32 = vpop.permute.xlu0 %31
    %vm33 = vcmask 786112
    %34 = vst.msk [vmem:[#allocation0] sm:$0x1] %vm33, %v32
    %s35 = scalar_lea.vmem %s0, 10
    %v36 = vld [vmem:[%s35] sm:$0x1]
    %37 = vrot.lane.b32.xlu0 %v36, 80
    %v38 = vpop.permute.xlu0 %37
    %vm39 = vcmask 720512
    %40 = vst.msk [vmem:[#allocation0] sm:$0x1] %vm39, %v38
    %s41 = scalar_lea.vmem %s0, 9
    %v42 = vld [vmem:[%s41] sm:$0x1]
    %43 = vrot.lane.b32.xlu0 %v42, 72
    %v44 = vpop.permute.xlu0 %43
    %vm45 = vcmask 654912
    %46 = vst.msk [vmem:[#allocation0] sm:$0x1] %vm45, %v44
    %s47 = scalar_lea.vmem %s0, 8
    %v48 = vld [vmem:[%s47] sm:$0x1]
    %49 = vrot.lane.b32.xlu0 %v48, 64
    %v50 = vpop.permute.xlu0 %49
    %vm51 = vcmask 589312
    %52 = vst.msk [vmem:[#allocation0] sm:$0x1] %vm51, %v50
    %s53 = scalar_lea.vmem %s0, 7
    %v54 = vld [vmem:[%s53] sm:$0x1]
    %55 = vrot.lane.b32.xlu0 %v54, 56
    %v56 = vpop.permute.xlu0 %55
    %vm57 = vcmask 523712
    %58 = vst.msk [vmem:[#allocation0] sm:$0x1] %vm57, %v56
    %s59 = scalar_lea.vmem %s0, 6
    %v60 = vld [vmem:[%s59] sm:$0x1]
    %61 = vrot.lane.b32.xlu0 %v60, 48
    %v62 = vpop.permute.xlu0 %61
    %vm63 = vcmask 458112
    %64 = vst.msk [vmem:[#allocation0] sm:$0x1] %vm63, %v62
    %s65 = scalar_lea.vmem %s0, 5
    %v66 = vld [vmem:[%s65] sm:$0x1]
    %67 = vrot.lane.b32.xlu0 %v66, 40
    %v68 = vpop.permute.xlu0 %67
    %vm69 = vcmask 392512
    %70 = vst.msk [vmem:[#allocation0] sm:$0x1] %vm69, %v68
    %s71 = scalar_lea.vmem %s0, 4
    %v72 = vld [vmem:[%s71] sm:$0x1]
    %73 = vrot.lane.b32.xlu0 %v72, 32
    %v74 = vpop.permute.xlu0 %73
    %vm75 = vcmask 326912
    %76 = vst.msk [vmem:[#allocation0] sm:$0x1] %vm75, %v74
    %s77 = scalar_lea.vmem %s0, 3
    %v78 = vld [vmem:[%s77] sm:$0x1]
    %79 = vrot.lane.b32.xlu0 %v78, 24
    %v80 = vpop.permute.xlu0 %79
    %vm81 = vcmask 261312
    %82 = vst.msk [vmem:[#allocation0] sm:$0x1] %vm81, %v80
    %s83 = scalar_lea.vmem %s0, 2
    %v84 = vld [vmem:[%s83] sm:$0x1]
    %85 = vrot.lane.b32.xlu0 %v84, 16
    %v86 = vpop.permute.xlu0 %85
    %vm87 = vcmask 195712
    %88 = vst.msk [vmem:[#allocation0] sm:$0x1] %vm87, %v86
    %s89 = scalar_lea.vmem %s0, 1
    %v90 = vld [vmem:[%s89] sm:$0x1]
    %91 = vrot.lane.b32.xlu0 %v90, 8
    %v92 = vpop.permute.xlu0 %91
    %vm93 = vcmask 130112
    %94 = vst.msk [vmem:[#allocation0] sm:$0x1] %vm93, %v92
    %s96 = ssub.s32 2, 1
    %v97 = vld [vmem:[#allocation0] sm:%s96]
    %s99 = ssub.s32 2, 1
    %100 = vst [vmem:[%s1] sm:%s99] %v97

</llo_original>
